<compile_context>
chip_gen: v6e
topology: v6e:2x2x1
jax: 0.10.0
libtpu: 0.0.40
codegen_flags: <defaults>
</compile_context>

<pallas_src>
import functools

import jax
import jax.numpy as jnp
from jax import lax
from jax.experimental import pallas as pl
from jax.experimental.pallas import tpu as pltpu

_EPS = 1e-7  # smp DiceLoss defaults: smooth=0.0, eps=1e-7, log_loss=False


def _combined_loss_kernel(logits_ref, tgt_ref, stats_ref, acc_ref, *,
                          hw, tile, t_per_split, tile_split, needs_mask):
    b_id = pl.program_id(1)
    t_id = pl.program_id(2)

    @pl.when(jnp.logical_and(b_id == 0, t_id == 0))
    def _():
        acc_ref[...] = jnp.zeros_like(acc_ref)

    # (C, T): classes on sublanes, pixels on the 128-lane axis.
    x = logits_ref[...].astype(jnp.float32)
    c, t = x.shape
    tgt = tgt_ref[...]                                        # (1, T) int32

    class_ids = lax.broadcasted_iota(jnp.int32, (c, t), dimension=0)
    hit = class_ids == tgt                                    # one-hot via compare

    if needs_mask:
        # Ragged tail tile: mask by global pixel index (no HBM padding).
        if tile_split:
            g_t = pl.program_id(0) * t_per_split + t_id
        else:
            g_t = t_id
        lane_idx = lax.broadcasted_iota(jnp.int32, (c, t), dimension=1)
        valid = (g_t * tile + lane_idx) < hw                  # (C, T) bool
        hit = jnp.logical_and(hit, valid)

    # Softmax / log-softmax along the class (sublane) axis; exp computed once.
    m = jnp.max(x, axis=0, keepdims=True)                     # (1, T)
    shifted = x - m                                           # (C, T)
    e = jnp.exp(shifted)                                      # (C, T) single EUP pass
    s = jnp.sum(e, axis=0, keepdims=True)                     # (1, T)
    p = e * pl.reciprocal(s, approx=False)                    # softmax probs
    lse = jnp.log(s)                                          # (1, T)

    zero = jnp.zeros_like(x)
    acc_ref[0] += jnp.where(hit, p, zero)                     # dice intersection
    if needs_mask:
        acc_ref[1] += jnp.where(valid, p, zero)               # per-class prob mass
    else:
        acc_ref[1] += p
    acc_ref[2] += hit.astype(jnp.float32)                     # per-class pixel counts
    acc_ref[3] += jnp.where(hit, lse - shifted, zero)         # per-class CE sums

    @pl.when(jnp.logical_and(b_id == pl.num_programs(1) - 1,
                             t_id == pl.num_programs(2) - 1))
    def _():
        # Single cross-lane reduction + single (4, C) store per megacore split.
        stats_ref[...] = jnp.sum(acc_ref[...], axis=-1)


def _pick_tile(hw, c, tile_hw):
    if tile_hw is None:
        # Keep logits double-buffer + f32 accumulator around ~8 MiB of VMEM.
        c_pad = max(8, ((c + 7) // 8) * 8)
        per_px_bytes = (2 * c + 4 * c_pad) * 4
        tile_hw = max(min((8 * 1024 * 1024) // per_px_bytes, 16384), 512)
    if hw <= tile_hw:
        return hw                                  # full row: always a legal block
    return max((tile_hw // 128) * 128, 128)        # lane-aligned tile


def combined_loss(outputs, targets, *, tile_hw=None):
    """outputs: (N, C, H, W) float logits; targets: (N, H, W) int class ids."""
    n, c, h, w = outputs.shape
    hw = h * w
    p_total = n * hw

    # Free reshapes only: no transpose, no padding copies in HBM.
    logits = outputs.reshape(n, c, hw)
    tgt = targets.reshape(n, 1, hw).astype(jnp.int32)

    tile = _pick_tile(hw, c, tile_hw)
    num_t = pl.cdiv(hw, tile)
    needs_mask = (hw % tile) != 0

    # 2-way megacore split (v7x): prefer the batch axis, else the pixel-tile axis.
    if n % 2 == 0:
        n_splits, tile_split = 2, False
        n_per, t_per = n // 2, num_t
    elif num_t % 2 == 0:
        n_splits, tile_split = 2, True
        n_per, t_per = n, num_t // 2
    else:
        n_splits, tile_split = 1, False
        n_per, t_per = n, num_t

    if tile_split:
        data_map = lambda s, b, t, _tp=t_per: (b, 0, s * _tp + t)
    else:
        data_map = lambda s, b, t, _np=n_per: (s * _np + b, 0, t)

    kernel = functools.partial(
        _combined_loss_kernel, hw=hw, tile=tile, t_per_split=t_per,
        tile_split=tile_split, needs_mask=needs_mask)

    stats = pl.pallas_call(
        kernel,
        out_shape=jax.ShapeDtypeStruct((n_splits, 4, c), jnp.float32),
        grid_spec=pltpu.PrefetchScalarGridSpec(
            num_scalar_prefetch=0,
            grid=(n_splits, n_per, t_per),
            in_specs=[
                pl.BlockSpec((None, c, tile), data_map),
                pl.BlockSpec((None, 1, tile), data_map),
            ],
            out_specs=pl.BlockSpec((None, 4, c), lambda s, b, t: (s, 0, 0)),
            scratch_shapes=[pltpu.VMEM((4, c, tile), jnp.float32)],
        ),
        compiler_params=pltpu.CompilerParams(
            dimension_semantics=("parallel", "arbitrary", "arbitrary")),
    )(logits, tgt)

    stats = jnp.sum(stats, axis=0)                 # merge megacore partials -> (4, C)
    inter, psum, tcnt, ce_per_class = stats[0], stats[1], stats[2], stats[3]

    # nn.CrossEntropyLoss(): mean over all pixels.
    ce_loss = jnp.sum(ce_per_class) / p_total

    # smp DiceLoss(mode='multiclass', from_logits=True), smooth=0, eps=1e-7.
    card = psum + tcnt
    dice_score = (2.0 * inter) / jnp.maximum(card, _EPS)
    dice_per_class = (1.0 - dice_score) * (tcnt > 0).astype(jnp.float32)
    dice_loss = jnp.mean(dice_per_class)

    return ce_loss + dice_loss


def _reference_loss(outputs, targets):
    """Pure-JAX reference mirroring torch CE + smp multiclass dice."""
    n, c, h, w = outputs.shape
    logits = jnp.transpose(outputs, (0, 2, 3, 1)).reshape(-1, c).astype(jnp.float32)
    tgt = targets.reshape(-1)
    logp = jax.nn.log_softmax(logits, axis=-1)
    onehot = jax.nn.one_hot(tgt, c, dtype=jnp.float32)
    ce = -jnp.mean(jnp.sum(logp * onehot, axis=-1))
    prob = jnp.exp(logp)
    inter = jnp.sum(prob * onehot, axis=0)
    card = jnp.sum(prob + onehot, axis=0)
    dice = (2.0 * inter) / jnp.maximum(card, _EPS)
    mask = (jnp.sum(onehot, axis=0) > 0).astype(jnp.float32)
    dice_loss = jnp.mean((1.0 - dice) * mask)
    return ce + dice_loss


if __name__ == "__main__":
    key = jax.random.PRNGKey(0)
    k1, k2 = jax.random.split(key)

    # Main test: module-sized inputs (batch split across the parallel axis).
    N, C, H, W = 2, 4, 16, 16
    outputs = jax.random.normal(k1, (N, C, H, W), dtype=jnp.float32)
    targets = jax.random.randint(k2, (N, H, W), 0, C, dtype=jnp.int32)

    loss = jax.block_until_ready(combined_loss(outputs, targets))
    ref = jax.block_until_ready(_reference_loss(outputs, targets))
    assert jnp.allclose(loss, ref, rtol=1e-5, atol=1e-5), (loss, ref)

    # Ragged-tail mask + batch split (H*W=208 with a 128-pixel tile).
    H2, W2 = 16, 13
    outputs2 = jax.random.normal(k1, (N, C, H2, W2), dtype=jnp.float32)
    targets2 = jax.random.randint(k2, (N, H2, W2), 0, C, dtype=jnp.int32)
    loss2 = jax.block_until_ready(combined_loss(outputs2, targets2, tile_hw=128))
    ref2 = jax.block_until_ready(_reference_loss(outputs2, targets2))
    assert jnp.allclose(loss2, ref2, rtol=1e-5, atol=1e-5), (loss2, ref2)

    # Ragged-tail mask + pixel-tile split (odd batch forces the tile-axis split).
    outputs3 = outputs2[:1]
    targets3 = targets2[:1]
    loss3 = jax.block_until_ready(combined_loss(outputs3, targets3, tile_hw=128))
    ref3 = jax.block_until_ready(_reference_loss(outputs3, targets3))
    assert jnp.allclose(loss3, ref3, rtol=1e-5, atol=1e-5), (loss3, ref3)

    print("KERNEL_OK")
</pallas_src>

<mosaic_0001>
module attributes {stable_mosaic.version = 11 : i64} {
  func.func @_combined_loss_kernel(%arg0: i32, %arg1: i32, %arg2: i32, %arg3: memref<1x4x256xf32, #tpu.memory_space<vmem>>, %arg4: memref<1x1x256xi32, #tpu.memory_space<vmem>>, %arg5: memref<1x4x4xf32, #tpu.memory_space<vmem>>, %arg6: memref<4x4x256xf32, #tpu.memory_space<vmem>>) attributes {dimension_semantics = [#tpu.dimension_semantics<parallel>, #tpu.dimension_semantics<arbitrary>, #tpu.dimension_semantics<arbitrary>], iteration_bounds = array<i64: 2, 1, 1>, scalar_prefetch = 0 : i64, scratch_operands = 1 : i64, tpu.core_type = #tpu.core_type<tc>, window_params = [{transform_indices = @transform_0, window_bounds = array<i64: 1, 4, 256>}, {transform_indices = @transform_1, window_bounds = array<i64: 1, 1, 256>}, {transform_indices = @transform_2, window_bounds = array<i64: 1, 4, 4>}]} {
    %c0_i32 = arith.constant 0 : i32
    %0 = arith.cmpi eq, %arg1, %c0_i32 : i32
    %c0_i32_0 = arith.constant 0 : i32
    %1 = arith.cmpi eq, %arg2, %c0_i32_0 : i32
    %2 = arith.andi %0, %1 : i1
    %3 = arith.extui %2 : i1 to i32
    %c0_i32_1 = arith.constant 0 : i32
    %4 = arith.cmpi ne, %3, %c0_i32_1 : i32
    scf.if %4 {
      %cst_33 = arith.constant 0.000000e+00 : f32
      %59 = vector.broadcast %cst_33 : f32 to vector<4x4x256xf32>
      %c0_34 = arith.constant 0 : index
      %c0_35 = arith.constant 0 : index
      %c0_36 = arith.constant 0 : index
      %60 = vector.load %arg6[%c0_34, %c0_35, %c0_36] : memref<4x4x256xf32, #tpu.memory_space<vmem>>, vector<4x4x256xf32>
      tpu.vector_store %arg6[%c0_34, %c0_35, %c0_36], %59 {strides = array<i32>} : memref<4x4x256xf32, #tpu.memory_space<vmem>>, vector<4x4x256xf32>,
    } else {
    }
    %c0 = arith.constant 0 : index
    %c0_2 = arith.constant 0 : index
    %c0_3 = arith.constant 0 : index
    %5 = vector.load %arg3[%c0, %c0_2, %c0_3] : memref<1x4x256xf32, #tpu.memory_space<vmem>>, vector<1x4x256xf32>
    %6 = vector.shape_cast %5 : vector<1x4x256xf32> to vector<4x256xf32>
    %c0_4 = arith.constant 0 : index
    %c0_5 = arith.constant 0 : index
    %c0_6 = arith.constant 0 : index
    %7 = vector.load %arg4[%c0_4, %c0_5, %c0_6] : memref<1x1x256xi32, #tpu.memory_space<vmem>>, vector<1x1x256xi32>
    %8 = vector.shape_cast %7 : vector<1x1x256xi32> to vector<1x256xi32>
    %9 = tpu.iota {dimensions = array<i32: 0>} : vector<4x256xi32>
    %10 = vector.broadcast %8 : vector<1x256xi32> to vector<4x256xi32>
    %11 = arith.cmpi eq, %9, %10 : vector<4x256xi32>
    %cst = arith.constant dense<0xFF800000> : vector<256xf32>
    %12 = vector.multi_reduction <maximumf>, %6, %cst [0] : vector<4x256xf32> to vector<256xf32>
    %13 = vector.shape_cast %12 : vector<256xf32> to vector<1x256xf32>
    %14 = vector.broadcast %13 : vector<1x256xf32> to vector<4x256xf32>
    %15 = arith.subf %6, %14 : vector<4x256xf32>
    %16 = math.exp %15 : vector<4x256xf32>
    %cst_7 = arith.constant dense<0.000000e+00> : vector<256xf32>
    %17 = vector.multi_reduction <add>, %16, %cst_7 [0] : vector<4x256xf32> to vector<256xf32>
    %18 = vector.shape_cast %17 : vector<256xf32> to vector<1x256xf32>
    %19 = tpu.reciprocal %18 : vector<1x256xf32> -> vector<1x256xf32>
    %20 = vector.broadcast %19 : vector<1x256xf32> to vector<4x256xf32>
    %21 = arith.mulf %16, %20 : vector<4x256xf32>
    %22 = math.log %18 : vector<1x256xf32>
    %cst_8 = arith.constant 0.000000e+00 : f32
    %23 = vector.broadcast %cst_8 : f32 to vector<4x256xf32>
    %c0_9 = arith.constant 0 : index
    %c0_10 = arith.constant 0 : index
    %c0_11 = arith.constant 0 : index
    %24 = vector.load %arg6[%c0_9, %c0_10, %c0_11] : memref<4x4x256xf32, #tpu.memory_space<vmem>>, vector<1x4x256xf32>
    %25 = vector.shape_cast %24 : vector<1x4x256xf32> to vector<4x256xf32>
    %26 = arith.select %11, %21, %23 : vector<4x256xi1>, vector<4x256xf32>
    %27 = arith.addf %25, %26 : vector<4x256xf32>
    %c0_12 = arith.constant 0 : index
    %c0_13 = arith.constant 0 : index
    %c0_14 = arith.constant 0 : index
    %28 = vector.load %arg6[%c0_12, %c0_13, %c0_14] : memref<4x4x256xf32, #tpu.memory_space<vmem>>, vector<1x4x256xf32>
    %29 = vector.shape_cast %28 : vector<1x4x256xf32> to vector<4x256xf32>
    %30 = vector.shape_cast %27 : vector<4x256xf32> to vector<1x4x256xf32>
    tpu.vector_store %arg6[%c0_12, %c0_13, %c0_14], %30 {strides = array<i32>} : memref<4x4x256xf32, #tpu.memory_space<vmem>>, vector<1x4x256xf32>,
    %c1 = arith.constant 1 : index
    %c0_15 = arith.constant 0 : index
    %c0_16 = arith.constant 0 : index
    %31 = vector.load %arg6[%c1, %c0_15, %c0_16] : memref<4x4x256xf32, #tpu.memory_space<vmem>>, vector<1x4x256xf32>
    %32 = vector.shape_cast %31 : vector<1x4x256xf32> to vector<4x256xf32>
    %33 = arith.addf %32, %21 : vector<4x256xf32>
    %c1_17 = arith.constant 1 : index
    %c0_18 = arith.constant 0 : index
    %c0_19 = arith.constant 0 : index
    %34 = vector.load %arg6[%c1_17, %c0_18, %c0_19] : memref<4x4x256xf32, #tpu.memory_space<vmem>>, vector<1x4x256xf32>
    %35 = vector.shape_cast %34 : vector<1x4x256xf32> to vector<4x256xf32>
    %36 = vector.shape_cast %33 : vector<4x256xf32> to vector<1x4x256xf32>
    tpu.vector_store %arg6[%c1_17, %c0_18, %c0_19], %36 {strides = array<i32>} : memref<4x4x256xf32, #tpu.memory_space<vmem>>, vector<1x4x256xf32>,
    %c2 = arith.constant 2 : index
    %c0_20 = arith.constant 0 : index
    %c0_21 = arith.constant 0 : index
    %37 = vector.load %arg6[%c2, %c0_20, %c0_21] : memref<4x4x256xf32, #tpu.memory_space<vmem>>, vector<1x4x256xf32>
    %38 = vector.shape_cast %37 : vector<1x4x256xf32> to vector<4x256xf32>
    %39 = arith.extui %11 : vector<4x256xi1> to vector<4x256xi32>
    %40 = arith.sitofp %39 : vector<4x256xi32> to vector<4x256xf32>
    %41 = arith.addf %38, %40 : vector<4x256xf32>
    %c2_22 = arith.constant 2 : index
    %c0_23 = arith.constant 0 : index
    %c0_24 = arith.constant 0 : index
    %42 = vector.load %arg6[%c2_22, %c0_23, %c0_24] : memref<4x4x256xf32, #tpu.memory_space<vmem>>, vector<1x4x256xf32>
    %43 = vector.shape_cast %42 : vector<1x4x256xf32> to vector<4x256xf32>
    %44 = vector.shape_cast %41 : vector<4x256xf32> to vector<1x4x256xf32>
    tpu.vector_store %arg6[%c2_22, %c0_23, %c0_24], %44 {strides = array<i32>} : memref<4x4x256xf32, #tpu.memory_space<vmem>>, vector<1x4x256xf32>,
    %c3 = arith.constant 3 : index
    %c0_25 = arith.constant 0 : index
    %c0_26 = arith.constant 0 : index
    %45 = vector.load %arg6[%c3, %c0_25, %c0_26] : memref<4x4x256xf32, #tpu.memory_space<vmem>>, vector<1x4x256xf32>
    %46 = vector.shape_cast %45 : vector<1x4x256xf32> to vector<4x256xf32>
    %47 = vector.broadcast %22 : vector<1x256xf32> to vector<4x256xf32>
    %48 = arith.subf %47, %15 : vector<4x256xf32>
    %49 = arith.select %11, %48, %23 : vector<4x256xi1>, vector<4x256xf32>
    %50 = arith.addf %46, %49 : vector<4x256xf32>
    %c3_27 = arith.constant 3 : index
    %c0_28 = arith.constant 0 : index
    %c0_29 = arith.constant 0 : index
    %51 = vector.load %arg6[%c3_27, %c0_28, %c0_29] : memref<4x4x256xf32, #tpu.memory_space<vmem>>, vector<1x4x256xf32>
    %52 = vector.shape_cast %51 : vector<1x4x256xf32> to vector<4x256xf32>
    %53 = vector.shape_cast %50 : vector<4x256xf32> to vector<1x4x256xf32>
    tpu.vector_store %arg6[%c3_27, %c0_28, %c0_29], %53 {strides = array<i32>} : memref<4x4x256xf32, #tpu.memory_space<vmem>>, vector<1x4x256xf32>,
    %c0_i32_30 = arith.constant 0 : i32
    %54 = arith.cmpi eq, %arg1, %c0_i32_30 : i32
    %c0_i32_31 = arith.constant 0 : i32
    %55 = arith.cmpi eq, %arg2, %c0_i32_31 : i32
    %56 = arith.andi %54, %55 : i1
    %57 = arith.extui %56 : i1 to i32
    %c0_i32_32 = arith.constant 0 : i32
    %58 = arith.cmpi ne, %57, %c0_i32_32 : i32
    scf.if %58 {
      %c0_33 = arith.constant 0 : index
      %c0_34 = arith.constant 0 : index
      %c0_35 = arith.constant 0 : index
      %59 = vector.load %arg6[%c0_33, %c0_34, %c0_35] : memref<4x4x256xf32, #tpu.memory_space<vmem>>, vector<4x4x256xf32>
      %cst_36 = arith.constant dense<0.000000e+00> : vector<4x4xf32>
      %60 = vector.multi_reduction <add>, %59, %cst_36 [2] : vector<4x4x256xf32> to vector<4x4xf32>
      %c0_37 = arith.constant 0 : index
      %c0_38 = arith.constant 0 : index
      %c0_39 = arith.constant 0 : index
      %61 = vector.load %arg5[%c0_37, %c0_38, %c0_39] : memref<1x4x4xf32, #tpu.memory_space<vmem>>, vector<1x4x4xf32>
      %62 = vector.shape_cast %61 : vector<1x4x4xf32> to vector<4x4xf32>
      %63 = vector.shape_cast %60 : vector<4x4xf32> to vector<1x4x4xf32>
      tpu.vector_store %arg5[%c0_37, %c0_38, %c0_39], %63 {strides = array<i32>} : memref<1x4x4xf32, #tpu.memory_space<vmem>>, vector<1x4x4xf32>,
    } else {
    }
    return
  }
  func.func @transform_0(%arg0: i32, %arg1: i32, %arg2: i32) -> (i32, i32, i32) {
    %c1_i32 = arith.constant 1 : i32
    %0 = arith.muli %arg0, %c1_i32 : i32
    %1 = arith.addi %0, %arg1 : i32
    %c0_i32 = arith.constant 0 : i32
    %c0_i32_0 = arith.constant 0 : i32
    return %1, %c0_i32, %arg2 : i32, i32, i32
  }
  func.func @transform_1(%arg0: i32, %arg1: i32, %arg2: i32) -> (i32, i32, i32) {
    %c1_i32 = arith.constant 1 : i32
    %0 = arith.muli %arg0, %c1_i32 : i32
    %1 = arith.addi %0, %arg1 : i32
    %c0_i32 = arith.constant 0 : i32
    %c0_i32_0 = arith.constant 0 : i32
    return %1, %c0_i32, %arg2 : i32, i32, i32
  }
  func.func @transform_2(%arg0: i32, %arg1: i32, %arg2: i32) -> (i32, i32, i32) {
    %c0_i32 = arith.constant 0 : i32
    %c0_i32_0 = arith.constant 0 : i32
    %c0_i32_1 = arith.constant 0 : i32
    return %arg0, %c0_i32, %c0_i32_0 : i32, i32, i32
  }
}

</mosaic_0001>

<llo_original>
// kernel: tpu_custom_call.1
$region0: #{tpu_custom_call.1}
  #allocation0 [shape = 'u32[]', space=smem, size = 0x4, offset = 0x4, fixed_abs, tag = 'smem constant byte address 0x4 - core index']
  #allocation1 [shape = 'u32[144,128]{1,0:T(1,128)}', space=vmem, size = 0x12000, scoped, tag = 'internal scratch']
  #allocation2 [shape = 'f32[4,4,256]{2,1,0:T(4,128)}', space=vmem, size = 0x4000, scoped, tag = 'scratch operand']
  %s0 = inlined_call_operand.hbm [shape: f32[2,4,256], index: 0, kind: input, shape index: {}]
  %s1 = inlined_call_operand.hbm [shape: s32[2,1,256], index: 1, kind: input, shape index: {}]
  %s2 = inlined_call_operand.hbm [shape: f32[2,4,4], index: 2, kind: output, shape index: {}]
  %s3 = sld [smem:[#allocation0]]
  $region57: #{tpu_custom_call.1} parent=0
    _
  %s5 = ssub.s32 1, %s3
  %s6 = scalar_select 0, %s5, %s3
  $region1: #{tpu_custom_call.1} parent=0
    #allocation3 [shape = 'u8[8192]{0}', space=vmem, size = 0x2000, scoped, tag = 'input window, operand 0']
    #allocation4 [shape = 's32[2]{0}', space=sflag, size = 0x8, scoped, tag = 'scoped memory for tpu_custom_call.1']
    #allocation5 [shape = 's32[2]{0}', space=sflag, size = 0x8, scoped, tag = 'scoped memory for tpu_custom_call.1']
    #allocation6 [shape = 'u8[2048]{0}', space=vmem, size = 0x800, scoped, tag = 'input window, operand 1']
    #allocation7 [shape = 's32[2]{0}', space=sflag, size = 0x8, scoped, tag = 'scoped memory for tpu_custom_call.1']
    #allocation8 [shape = 'u8[4096]{0}', space=vmem, size = 0x1000, scoped, tag = 'output window, operand 0']
    %7 = vsyncpa [#allocation4], 0
    %s8 = scalar_lea.sflag [#allocation4], 1
    %9 = vsyncpa %s8, 0
    %10 = vsyncpa [#allocation7], 0
    %s11 = scalar_lea.sflag [#allocation7], 1
    %12 = vsyncpa %s11, 0
    %13 = vsyncpa [#allocation5], 0
    %s14 = scalar_lea.sflag [#allocation5], 1
    %15 = vsyncpa %s14, 0
    loop: start=0, step=1, limit=4
    $region2: #{tpu_custom_call.1} parent=1 // loop_pre_header
      _
    $region3: #{tpu_custom_call.1} parent=1 // loop_header
      %s17 = sphi 0, %s21
      %p18 = scmp.ge.s32.totalorder %s17, 4
      %s24 = sphi 0, %s43
      %s25 = sphi 0, %s39
      %s26 = sphi 0, %s35
      %s27 = sphi 0, %s24
      %s28 = sphi 0, %s25
      %s29 = sphi 0, %s26
      %s30 = sphi 0, %s27
      %s31 = sphi 0, %s28
      %s32 = sphi 0, %s29
      %s50 = sphi 0, %s52
      %s53 = sphi 0, %s50
      %s54 = sphi 0, %s53
      %s70 = sphi 0, %s54
      %s80 = sphi 0, %s82
      %s83 = sphi 0, %s80
      %s84 = sphi 0, %s83
      %s100 = sphi 0, %s84
      %s106 = sphi 0, %s108
      %s109 = sphi 0, %s106
      %s110 = sphi 0, %s109
      %s126 = sphi 0, %s110
    $region4: #{tpu_custom_call.1} parent=1 // loop_header_branch
      %20 = sbr.rel (%p18) target = $region8
    $region5: #{tpu_custom_call.1} parent=1 // loop_body
      %s22 = ssub.s32 %s17, 1
      %s23 = ssub.s32 %s17, 2
      %s33 = sadd.s32 1, %s26
      %p34 = scmp.ge.s32.totalorder %s33, 1
      %s35 = scalar_select %p34, 0, %s33
      %s36 = sadd.s32 1, %s25
      %s37 = scalar_select %p34, %s36, %s25
      %p38 = scmp.ge.s32.totalorder %s37, 1
      %s39 = scalar_select %p38, 0, %s37
      %s40 = sadd.s32 1, %s24
      %s41 = scalar_select %p38, %s40, %s24
      %p42 = scmp.ge.s32.totalorder %s41, 2
      %s43 = scalar_select %p42, 0, %s41
      %s44 = sadd.s32 %s24, %s25
      %s45 = sadd.s32 %s43, %s39
      %s46 = ssub.s32 %s44, %s45
      %s47 = ssub.s32 %s26, %s35
      %s48 = sor.u32 %s46, %s47
      %p49 = scmp.eq.s32.totalorder %s48, 0
      %s51 = sadd.s32 %s50, 1
      %s52 = scalar_select %p49, %s50, %s51
      %p55 = pneg %p49
      %p56 = scmp.eq.s32.totalorder %s17, 1
      %p57 = por %p55, %p56
      %p58 = scmp.ne.s32.totalorder %s50, %s53
      %p59 = scmp.eq.s32.totalorder %s17, 0
      %p60 = por %p58, %p59
      %p61 = scmp.ne.s32.totalorder %s50, %s53
      %p62 = scmp.eq.s32.totalorder %s22, 1
      %p63 = por %p61, %p62
      %p64 = scmp.ne.s32.totalorder %s53, %s54
      %p65 = scmp.eq.s32.totalorder %s22, 0
      %p66 = por %p64, %p65
      %p67 = scmp.ne.s32.totalorder %s53, %s54
      %p68 = scmp.eq.s32.totalorder %s23, 1
      %p69 = por %p67, %p68
      %p71 = scmp.ne.s32.totalorder %s54, %s70
      %p72 = scmp.eq.s32.totalorder %s23, 0
      %p73 = por %p71, %p72
      %s74 = sadd.s32 %s24, %s25
      %s75 = sadd.s32 %s43, %s39
      %s76 = ssub.s32 %s74, %s75
      %s77 = ssub.s32 %s26, %s35
      %s78 = sor.u32 %s76, %s77
      %p79 = scmp.eq.s32.totalorder %s78, 0
      %s81 = sadd.s32 %s80, 1
      %s82 = scalar_select %p79, %s80, %s81
      %p85 = pneg %p79
      %p86 = scmp.eq.s32.totalorder %s17, 1
      %p87 = por %p85, %p86
      %p88 = scmp.ne.s32.totalorder %s80, %s83
      %p89 = scmp.eq.s32.totalorder %s17, 0
      %p90 = por %p88, %p89
      %p91 = scmp.ne.s32.totalorder %s80, %s83
      %p92 = scmp.eq.s32.totalorder %s22, 1
      %p93 = por %p91, %p92
      %p94 = scmp.ne.s32.totalorder %s83, %s84
      %p95 = scmp.eq.s32.totalorder %s22, 0
      %p96 = por %p94, %p95
      %p97 = scmp.ne.s32.totalorder %s83, %s84
      %p98 = scmp.eq.s32.totalorder %s23, 1
      %p99 = por %p97, %p98
      %p101 = scmp.ne.s32.totalorder %s84, %s100
      %p102 = scmp.eq.s32.totalorder %s23, 0
      %p103 = por %p101, %p102
      %s104 = ssub.s32 %s24, %s43
      %p105 = scmp.eq.s32.totalorder %s104, 0
      %s107 = sadd.s32 %s106, 1
      %s108 = scalar_select %p105, %s106, %s107
      %p111 = pneg %p105
      %p112 = scmp.eq.s32.totalorder %s17, 1
      %p113 = por %p111, %p112
      %p114 = scmp.ne.s32.totalorder %s106, %s109
      %p115 = scmp.eq.s32.totalorder %s17, 0
      %p116 = por %p114, %p115
      %p117 = scmp.ne.s32.totalorder %s106, %s109
      %p118 = scmp.eq.s32.totalorder %s22, 1
      %p119 = por %p117, %p118
      %p120 = scmp.ne.s32.totalorder %s109, %s110
      %p121 = scmp.eq.s32.totalorder %s22, 0
      %p122 = por %p120, %p121
      %p123 = scmp.ne.s32.totalorder %s109, %s110
      %p124 = scmp.eq.s32.totalorder %s23, 1
      %p125 = por %p123, %p124
      %p127 = scmp.ne.s32.totalorder %s110, %s126
      %p128 = scmp.eq.s32.totalorder %s23, 0
      %p129 = por %p127, %p128
      %p130 = scmp.le.s32.totalorder 1, %s17
      %p131 = scmp.lt.s32.totalorder %s17, 3
      %p132 = pnand %p130, %p131
      %p133 = pneg %p132
      // Predicated region
      $region9: #{tpu_custom_call.1} parent=5 // pred_check
        _
      $region10: #{tpu_custom_call.1} parent=5 // pred_check_branch
        %135 = sbr.rel (%p132) target = $region12
      $region11: #{tpu_custom_call.1} parent=5 // pred_region
        %s136 = ssub.s32 %s17, 1
      $region12: #{tpu_custom_call.1} parent=5 // pred_fallthru
        _
      %p137 = scmp.lt.s32.totalorder %s17, 2
      // Predicated region
      $region13: #{tpu_custom_call.1} parent=5 // pred_check
        %p138 = pneg %p137
      $region14: #{tpu_custom_call.1} parent=5 // pred_check_branch
        %140 = sbr.rel (%p138) target = $region16
      $region15: #{tpu_custom_call.1} parent=5 // pred_region
        // Predicated region
        $region17: #{tpu_custom_call.1} parent=15 // pred_check
          %p141 = pneg %p60
        $region18: #{tpu_custom_call.1} parent=15 // pred_check_branch
          %143 = sbr.rel (%p141) target = $region20
        $region19: #{tpu_custom_call.1} parent=15 // pred_region
          %s144 = sand.u32 %s50, 1
          %s145 = scalar_lea.sflag [#allocation4], %s144
          %s146 = sand.u32 %s50, 1
          %s147 = smul.addr %s146, 8
          %s148 = scalar_lea.vmem [#allocation3], %s147
          %s149 = sadd.s32 %s24, %s25
          %s150 = smul.u32 2, %s26
          %s152 = ssub.s32 128, 128
          %153 = vsyncadd %s145, %s152
          %s154 = smul.addr %s149, 2
          %s155 = sadd.s32 %s150, %s154
          %s156 = smul.addr %s155, 64
          %s157 = scalar_lea.hbm %s0, %s156
          %s159 = sshll.u32 %s148, 4
          %s160 = int_to_ptr.vmem [resolvable:$true] %s159
          %162 = dma.hbm_to_vmem [thread:$0]  %s157, 128, %s160, %s145
        $region20: #{tpu_custom_call.1} parent=15 // pred_fallthru
          _
        // Predicated region
        $region21: #{tpu_custom_call.1} parent=15 // pred_check
          %p163 = pneg %p90
        $region22: #{tpu_custom_call.1} parent=15 // pred_check_branch
          %165 = sbr.rel (%p163) target = $region24
        $region23: #{tpu_custom_call.1} parent=15 // pred_region
          %s166 = sand.u32 %s80, 1
          %s167 = scalar_lea.sflag [#allocation7], %s166
          %s168 = sand.u32 %s80, 1
          %s169 = smul.addr %s168, 2
          %s170 = scalar_lea.vmem [#allocation6], %s169
          %s171 = sadd.s32 %s24, %s25
          %s172 = smul.u32 2, %s26
          %s174 = ssub.s32 32, 32
          %175 = vsyncadd %s167, %s174
          %s176 = smul.addr %s171, 2
          %s177 = sadd.s32 %s172, %s176
          %s178 = smul.addr %s177, 16
          %s179 = scalar_lea.hbm %s1, %s178
          %s181 = sshll.u32 %s170, 4
          %s182 = int_to_ptr.vmem [resolvable:$true] %s181
          %184 = dma.hbm_to_vmem [thread:$0]  %s179, 32, %s182, %s167
        $region24: #{tpu_custom_call.1} parent=15 // pred_fallthru
          _
      $region16: #{tpu_custom_call.1} parent=5 // pred_fallthru
        _
      %p185 = scmp.le.s32.totalorder 1, %s17
      %p186 = scmp.lt.s32.totalorder %s17, 3
      %p187 = pnand %p185, %p186
      %p188 = pneg %p187
      // Predicated region
      $region25: #{tpu_custom_call.1} parent=5 // pred_check
        _
      $region26: #{tpu_custom_call.1} parent=5 // pred_check_branch
        %190 = sbr.rel (%p187) target = $region28
      $region27: #{tpu_custom_call.1} parent=5 // pred_region
        %s191 = ssub.s32 %s17, 1
        %s192 = sand.u32 %s53, 1
        %s193 = scalar_lea.sflag [#allocation4], %s192
        %s194 = sand.u32 %s53, 1
        %s195 = smul.addr %s194, 8
        %s196 = scalar_lea.vmem [#allocation3], %s195
        // Predicated region
        $region29: #{tpu_custom_call.1} parent=27 // pred_check
          %p197 = pneg %p66
        $region30: #{tpu_custom_call.1} parent=27 // pred_check_branch
          %199 = sbr.rel (%p197) target = $region32
        $region31: #{tpu_custom_call.1} parent=27 // pred_region
          %200 = dma.done %s193, 128
        $region32: #{tpu_custom_call.1} parent=27 // pred_fallthru
          _
        %s201 = sand.u32 %s83, 1
        %s202 = scalar_lea.sflag [#allocation7], %s201
        %s203 = sand.u32 %s83, 1
        %s204 = smul.addr %s203, 2
        %s205 = scalar_lea.vmem [#allocation6], %s204
        // Predicated region
        $region33: #{tpu_custom_call.1} parent=27 // pred_check
          %p206 = pneg %p96
        $region34: #{tpu_custom_call.1} parent=27 // pred_check_branch
          %208 = sbr.rel (%p206) target = $region36
        $region35: #{tpu_custom_call.1} parent=27 // pred_region
          %209 = dma.done %s202, 32
        $region36: #{tpu_custom_call.1} parent=27 // pred_fallthru
          _
        %s210 = sand.u32 %s53, 1
        %s211 = scalar_lea.sflag [#allocation4], %s210
        %s212 = sand.u32 %s53, 1
        %s213 = smul.addr %s212, 8
        %s214 = scalar_lea.vmem [#allocation3], %s213
        %p215 = pneg %p66
        %p216 = pneg %p63
        %s217 = sand.u32 %s83, 1
        %s218 = scalar_lea.sflag [#allocation7], %s217
        %s219 = sand.u32 %s83, 1
        %s220 = smul.addr %s219, 2
        %s221 = scalar_lea.vmem [#allocation6], %s220
        %p222 = pneg %p96
        %p223 = pneg %p93
        %p224 = pneg %p122
        %p225 = pneg %p119
        %s226 = sand.u32 %s109, 1
        %s227 = scalar_lea.sflag [#allocation5], %s226
        %s228 = sand.u32 %s109, 1
        %s229 = smul.addr %s228, 4
        %s230 = scalar_lea.vmem [#allocation8], %s229
        %s231 = sadd.s32 %s27, %s28
        %s232 = smul.u32 2, %s29
        %s233 = sadd.s32 %s27, %s28
        %s234 = smul.u32 2, %s29
        %p235 = scmp.eq.s32.totalorder %s28, 0
        %p236 = scmp.eq.s32.totalorder %s29, 0
        %p237 = pnand %p235, %p236
        %p238 = pneg %p237
        // Predicated region
        $region37: #{tpu_custom_call.1} parent=27 // pred_check
          _
        $region38: #{tpu_custom_call.1} parent=27 // pred_check_branch
          %240 = sbr.rel (%p237) target = $region40
        $region39: #{tpu_custom_call.1} parent=27 // pred_region
          %241 = vst [vmem:[#allocation2] sm:$0xff] 0.0
          %242 = vst [vmem:[#allocation2 + $0x8] sm:$0xff] 0.0
          %243 = vst [vmem:[#allocation2 + $0x10] sm:$0xff] 0.0
          %244 = vst [vmem:[#allocation2 + $0x18] sm:$0xff] 0.0
        $region40: #{tpu_custom_call.1} parent=27 // pred_fallthru
          _
        %v245 = vld [vmem:[%s196] sm:$0xff]
        %v246 = vld [vmem:[%s205] sm:$0x3]
        %v247 = vlaneseq
        %v248 = vshrl.u32 %v247, 7
        %v249 = vlaneseq
        %v250 = vshrl.u32 %v249, 7
        %v251 = vsub.s32 0, %v250
        %v252 = vrot.slane %v246, %v251
        %v253 = vlaneseq
        %v254 = vshrl.u32 %v253, 7
        %v255 = vsub.s32 1, %v254
        %v256 = vrot.slane %v246, %v255
        %vm257 = vcmp.eq.s32.totalorder %v248, %v252
        %vm258 = vcmp.eq.s32.totalorder %v248, %v256
        %v260 = vcombine.high %v245, %v245
        %vm262 = vcmask 1043456
        %v263 = vsel %vm262, %v245, -inf
        %v264 = vrot.slane %v263, 4
        %v265 = vmax.f32 %v263, %v264
        %v266 = vrot.slane %v265, 2
        %v267 = vmax.f32 %v265, %v266
        %v268 = vrot.slane %v267, 1
        %v269 = vmax.f32 %v267, %v268
        %v270 = vsel %vm262, %v260, -inf
        %v271 = vrot.slane %v270, 4
        %v272 = vmax.f32 %v270, %v271
        %v273 = vrot.slane %v272, 2
        %v274 = vmax.f32 %v272, %v273
        %v275 = vrot.slane %v274, 1
        %v276 = vmax.f32 %v274, %v275
        %v279 = vcombine.low %v269, %v276
        %v281 = vsub.f32 %v245, %v279
        %v282 = vmul.f32 %v281, 1.442695
        %v283 = vpow.pop %v282
        %v285 = vcombine.high %v283, %v283
        %v287 = vsel %vm262, %v283, 0.0
        %v288 = vrot.slane %v287, 4
        %v289 = vadd.f32 %v287, %v288
        %v290 = vrot.slane %v289, 2
        %v291 = vadd.f32 %v289, %v290
        %v292 = vrot.slane %v291, 1
        %v293 = vadd.f32 %v291, %v292
        %v294 = vsel %vm262, %v285, 0.0
        %v295 = vrot.slane %v294, 4
        %v296 = vadd.f32 %v294, %v295
        %v297 = vrot.slane %v296, 2
        %v298 = vadd.f32 %v296, %v297
        %v299 = vrot.slane %v298, 1
        %v300 = vadd.f32 %v298, %v299
        %v301 = vrcp.pop %v293
        %v302 = vrcp.pop %v300
        %v305 = vcombine.low %v301, %v302
        %v307 = vmul.f32 %v283, %v305
        %v308 = vlog2.pop %v293
        %v309 = vmul.f32 %v308, 0.6931472
        %v310 = vlog2.pop %v300
        %v311 = vmul.f32 %v310, 0.6931472
        %v312 = vld [vmem:[#allocation2] sm:$0xff]
        %v314 = vcombine.high %v307, %v307
        %v316 = vsel %vm257, %v307, 0.0
        %v317 = vsel %vm258, %v314, 0.0
        %v320 = vcombine.low %v316, %v317
        %v322 = vadd.f32 %v312, %v320
        %323 = vst [vmem:[#allocation2] sm:$0xff] %v322
        %s324 = scalar_lea.vmem [#allocation2], 8
        %v325 = vld [vmem:[%s324] sm:$0xff]
        %v326 = vadd.f32 %v325, %v307
        %327 = vst [vmem:[%s324] sm:$0xff] %v326
        %s328 = scalar_lea.vmem [#allocation2], 16
        %v329 = vld [vmem:[%s328] sm:$0xff]
        %v330 = vsel %vm257, 1, 0
        %v331 = vsel %vm258, 1, 0
        %v332 = vcvt.s32.f32 %v330
        %v333 = vcvt.s32.f32 %v331
        %v336 = vcombine.low %v332, %v333
        %v338 = vadd.f32 %v329, %v336
        %339 = vst [vmem:[%s328] sm:$0xff] %v338
        %s340 = scalar_lea.vmem [#allocation2], 24
        %v341 = vld [vmem:[%s340] sm:$0xff]
        %v343 = vcombine.high %v281, %v281
        %v345 = vsub.f32 %v309, %v281
        %v346 = vsub.f32 %v311, %v343
        %v347 = vsel %vm257, %v345, 0.0
        %v348 = vsel %vm258, %v346, 0.0
        %v351 = vcombine.low %v347, %v348
        %v353 = vadd.f32 %v341, %v351
        %354 = vst [vmem:[%s340] sm:$0xff] %v353
        // Predicated region
        $region41: #{tpu_custom_call.1} parent=27 // pred_check
          _
        $region42: #{tpu_custom_call.1} parent=27 // pred_check_branch
          %356 = sbr.rel (%p237) target = $region44
        $region43: #{tpu_custom_call.1} parent=27 // pred_region
          %v357 = vld [vmem:[#allocation2] sm:$0xff]
          %v358 = vld [vmem:[#allocation2 + $0x8] sm:$0xff]
          %v359 = vld [vmem:[#allocation2 + $0x10] sm:$0xff]
          %v360 = vld [vmem:[#allocation2 + $0x18] sm:$0xff]
          %v365 = vcombine.high %v357, %v357
          %v366 = vcombine.high %v358, %v358
          %v367 = vcombine.high %v359, %v359
          %v368 = vcombine.high %v360, %v360
          %v373 = vsel %vm262, %v357, 0.0
          %v374 = vsel %vm262, %v365, 0.0
          %v375 = vadd.f32 %v373, %v374
          %376 = vadd.xlane.f32.xlu0 %v375
          %v377 = vpop.xlane.xlu0 %376
          %v378 = vsel %vm262, %v358, 0.0
          %v379 = vsel %vm262, %v366, 0.0
          %v380 = vadd.f32 %v378, %v379
          %381 = vadd.xlane.f32.xlu0 %v380
          %v382 = vpop.xlane.xlu0 %381
          %v383 = vsel %vm262, %v359, 0.0
          %v384 = vsel %vm262, %v367, 0.0
          %v385 = vadd.f32 %v383, %v384
          %386 = vadd.xlane.f32.xlu0 %v385
          %v387 = vpop.xlane.xlu0 %386
          %v388 = vsel %vm262, %v360, 0.0
          %v389 = vsel %vm262, %v368, 0.0
          %v390 = vadd.f32 %v388, %v389
          %391 = vadd.xlane.f32.xlu0 %v390
          %v392 = vpop.xlane.xlu0 %391
          %v397 = vlaneseq
          %v398 = vand.u32 %v397, 127
          %v399 = vlaneseq
          %v400 = vshrl.u32 %v399, 7
          %v401 = vsub.s32 %v398, %v400
          %v402 = vrot.slane %v377, %v401
          %v403 = vlaneseq
          %v404 = vshrl.u32 %v403, 7
          %v405 = vsub.s32 %v398, %v404
          %v406 = vrot.slane %v382, %v405
          %v407 = vlaneseq
          %v408 = vshrl.u32 %v407, 7
          %v409 = vsub.s32 %v398, %v408
          %v410 = vrot.slane %v387, %v409
          %v411 = vlaneseq
          %v412 = vshrl.u32 %v411, 7
          %v413 = vsub.s32 %v398, %v412
          %v414 = vrot.slane %v392, %v413
          %vm415 = vcmask 1041409
          %v416 = vsel %vm415, %v406, %v402
          %vm417 = vcmask 1042434
          %v418 = vsel %vm417, %v410, %v416
          %vm419 = vcmask 1043459
          %v420 = vsel %vm419, %v414, %v418
          %vm422 = vcmask 27648
          %423 = vst.msk [vmem:[%s230] sm:$0xf] %vm422, %v420
        $region44: #{tpu_custom_call.1} parent=27 // pred_fallthru
          _
        %s424 = sand.u32 %s109, 1
        %s425 = scalar_lea.sflag [#allocation5], %s424
        %s426 = sand.u32 %s109, 1
        %s427 = smul.addr %s426, 4
        %s428 = scalar_lea.vmem [#allocation8], %s427
        // Predicated region
        $region45: #{tpu_custom_call.1} parent=27 // pred_check
          %p429 = pneg %p119
        $region46: #{tpu_custom_call.1} parent=27 // pred_check_branch
          %431 = sbr.rel (%p429) target = $region48
        $region47: #{tpu_custom_call.1} parent=27 // pred_region
          %s433 = ssub.s32 64, 64
          %434 = vsyncadd %s425, %s433
          %s435 = smul.addr %s27, 64
          %s436 = scalar_lea.hbm %s2, %s435
          %s438 = sshll.u32 %s428, 4
          %s439 = int_to_ptr.vmem [resolvable:$true] %s438
          %441 = dma.vmem_to_hbm [thread:$0]  %s439, 64, %s436, %s425
        $region48: #{tpu_custom_call.1} parent=27 // pred_fallthru
          _
      $region28: #{tpu_custom_call.1} parent=5 // pred_fallthru
        _
      %p442 = scmp.le.s32.totalorder 2, %s17
      // Predicated region
      $region49: #{tpu_custom_call.1} parent=5 // pred_check
        %p443 = pneg %p442
      $region50: #{tpu_custom_call.1} parent=5 // pred_check_branch
        %445 = sbr.rel (%p443) target = $region52
      $region51: #{tpu_custom_call.1} parent=5 // pred_region
        %s446 = ssub.s32 %s17, 2
        // Predicated region
        $region53: #{tpu_custom_call.1} parent=51 // pred_check
          %p447 = pneg %p125
        $region54: #{tpu_custom_call.1} parent=51 // pred_check_branch
          %449 = sbr.rel (%p447) target = $region56
        $region55: #{tpu_custom_call.1} parent=51 // pred_region
          %s450 = sand.u32 %s110, 1
          %s451 = scalar_lea.sflag [#allocation5], %s450
          %s452 = sand.u32 %s110, 1
          %s453 = smul.addr %s452, 4
          %s454 = scalar_lea.vmem [#allocation8], %s453
          %455 = dma.done %s451, 64
        $region56: #{tpu_custom_call.1} parent=51 // pred_fallthru
          _
      $region52: #{tpu_custom_call.1} parent=5 // pred_fallthru
        _
    $region6: #{tpu_custom_call.1} parent=1 // loop_footer
      %s21 = sadd.s32 1, %s17
    $region7: #{tpu_custom_call.1} parent=1 // loop_footer_branch
      %16 = sbr.rel target = $region3
    $region8: #{tpu_custom_call.1} parent=1 // loop_exit
      _
    %456 = vsyncpa [#allocation4], 1
    %s457 = scalar_lea.sflag [#allocation4], 1
    %458 = vsyncpa %s457, 1
    %459 = vsyncpa [#allocation7], 1
    %s460 = scalar_lea.sflag [#allocation7], 1
    %461 = vsyncpa %s460, 1
    %462 = vsyncpa [#allocation5], 1
    %s463 = scalar_lea.sflag [#allocation5], 1
    %464 = vsyncpa %s463, 1

</llo_original>
